<compile_context>
chip_gen: v5e
topology: v5e:2x2
jax: 0.10.0
libtpu: 0.0.40
codegen_flags: <defaults>
</compile_context>

<pallas_src>
import jax
import jax.numpy as jnp
from jax.experimental import pallas as pl
from jax.experimental.pallas import tpu as pltpu


def _vmem_capacity_bytes(default: int = 64 * 1024 * 1024) -> int:
    """Physical VMEM per core, with a conservative (v7x-sized) fallback."""
    try:
        info = pltpu.get_tpu_info()
        cap = getattr(info, "vmem_capacity_bytes", None)
        if cap:
            return int(cap)
    except Exception:
        pass
    return default


def _make_kernel(groups: int):
    """x/o blocks: (TILE_R, width) with width = groups * C; each 128-lane row
    packs `groups` original feature rows of `channels` elements each.
    All reductions / broadcasts go through exact 0/1 f32 MXU matmuls."""

    if groups == 1:
        def kernel(x_ref, mean_ref, m1_ref, o_ref):
            x = x_ref[...].astype(jnp.float32)                     # (T, C)
            # Row sum-of-squares on the MXU (m1 = ones((C, 1), f32); exact).
            sumsq = jnp.dot(x * x, m1_ref[...],
                            preferred_element_type=jnp.float32)    # (T, 1)
            inv = jax.lax.rsqrt(sumsq)                             # EUP, (T, 1)
            # (1, C) mean broadcasts over sublanes; (T, 1) inv over lanes.
            o_ref[...] = ((x - mean_ref[...]) * inv).astype(o_ref.dtype)
        return kernel

    def kernel(x_ref, mean_ref, m1_ref, m2_ref, o_ref):
        x = x_ref[...].astype(jnp.float32)                         # (T, G*C)
        # Segmented (per original row) sum of squares: 0/1 block matrix, exact.
        sumsq_g = jnp.dot(x * x, m1_ref[...],
                          preferred_element_type=jnp.float32)      # (T, G)
        inv_g = jax.lax.rsqrt(sumsq_g)                             # EUP, (T, G)
        # Broadcast each group's 1/norm across its C lanes: tiny exact 0/1 matmul.
        inv = jnp.dot(inv_g, m2_ref[...],
                      preferred_element_type=jnp.float32)          # (T, G*C)
        o_ref[...] = ((x - mean_ref[...]) * inv).astype(o_ref.dtype)
    return kernel


def feature_normalizer(feature: jax.Array, running_mean: jax.Array) -> jax.Array:
    """feature: [B, H, W, C] channels-last; running_mean: [C]."""
    B, H, W, C = feature.shape
    rows = B * H * W
    dtype = feature.dtype

    LANES = 128
    GRAN = 32   # row granularity: covers sublane packing for f32/bf16/int8/fp8

    # ---- lane-dense folding: pack g = 128 // C original rows per 128-lane row.
    if 0 < C < LANES and LANES % C == 0:
        groups = LANES // C
    else:
        groups = 1
    pad_rows = (-rows) % groups

    x_flat = feature.reshape(rows, C)
    if pad_rows:
        # Pad with ones (finite norm -> no inf/nan in padded rows); sliced off
        # after the kernel.
        x_flat = jnp.pad(x_flat, ((0, pad_rows), (0, 0)), constant_values=1)
    rows_p = rows + pad_rows
    n_rows = rows_p // groups
    width = groups * C
    x2d = x_flat.reshape(n_rows, width)        # free row-major reshape

    # ---- grid-invariant constants (hoisted out of the kernel).
    mean_tiled = jnp.tile(running_mean.astype(jnp.float32).reshape(1, C),
                          (1, groups))                               # (1, width)
    gid = jnp.arange(width, dtype=jnp.int32) // C                    # lane -> group
    m1 = (gid[:, None] == jnp.arange(groups, dtype=jnp.int32)[None, :]
          ).astype(jnp.float32)                                      # (width, G)
    m2 = m1.T                                                        # (G, width)

    # ---- chip-adaptive block sizing (budget expressed in f32-equivalent bytes).
    vmem_cap = _vmem_capacity_bytes()
    if vmem_cap >= 96 * 1024 * 1024:            # v5e / v6e: 128 MiB physical VMEM
        block_f32_bytes = 6 * 1024 * 1024
        vmem_limit = 64 * 1024 * 1024
    else:                                        # v7x (64 MiB / TC) or unknown
        block_f32_bytes = 3 * 1024 * 1024
        vmem_limit = 48 * 1024 * 1024

    tile_rows = max(GRAN, (block_f32_bytes // (width * 4)) // GRAN * GRAN)
    # Ensure >= 2 (ideally >= 4) grid steps when there is enough work, so the
    # "parallel" row axis can split across v7x's two TensorCores.
    for min_steps in (4, 2):
        if n_rows >= min_steps * GRAN:
            cap = max(GRAN, (n_rows // min_steps) // GRAN * GRAN)
            tile_rows = min(tile_rows, cap)
            break
    else:
        tile_rows = min(tile_rows, n_rows)       # tiny array: one full block

    grid = (pl.cdiv(n_rows, tile_rows),)         # tail block handled by masking

    kernel = _make_kernel(groups)

    in_specs = [
        pl.BlockSpec((tile_rows, width), lambda i: (i, 0)),
        pl.BlockSpec((1, width), lambda i: (0, 0)),        # constant block
        pl.BlockSpec((width, groups), lambda i: (0, 0)),   # constant block
    ]
    operands = [x2d, mean_tiled, m1]
    if groups > 1:
        in_specs.append(pl.BlockSpec((groups, width), lambda i: (0, 0)))
        operands.append(m2)

    out2d = pl.pallas_call(
        kernel,
        out_shape=jax.ShapeDtypeStruct((n_rows, width), dtype),
        grid_spec=pltpu.PrefetchScalarGridSpec(
            num_scalar_prefetch=0,
            grid=grid,
            in_specs=in_specs,
            out_specs=pl.BlockSpec((tile_rows, width), lambda i: (i, 0)),
        ),
        compiler_params=pltpu.CompilerParams(
            dimension_semantics=("parallel",),   # lets v7x shard rows over 2 TCs
            vmem_limit_bytes=vmem_limit,
        ),
    )(*operands)

    out = out2d.reshape(rows_p, C)
    if pad_rows:
        out = out[:rows]
    return out.reshape(B, H, W, C)


def _reference(feature, running_mean):
    nrm = jnp.sqrt(jnp.sum(feature.astype(jnp.float32) ** 2, axis=-1, keepdims=True))
    return (feature - running_mean[None, None, None, :]) / nrm


if __name__ == "__main__":
    key = jax.random.PRNGKey(0)
    k_feat, k_reg = jax.random.split(key)

    # Small shapes: feature is [B, H, W, C] channels-last; C must match running_mean.
    B, H, W, C = 2, 4, 8, 32
    feature = jax.random.normal(k_feat, (B, H, W, C), dtype=jnp.float32)

    # Build running_mean exactly as MeanRegister's first call would:
    # mean over axes (0, -2, -1) of a synthetic NCHW tensor with C channels.
    register_input_nchw = jax.random.normal(k_reg, (3, C, 5, 7), dtype=jnp.float32)
    running_mean = jnp.mean(register_input_nchw, axis=(0, 2, 3))   # shape [C]

    out = feature_normalizer(feature, running_mean)
    out = jax.block_until_ready(out)

    ref = _reference(feature, running_mean)
    assert out.shape == (B, H, W, C)
    assert jnp.allclose(out, ref, atol=1e-5, rtol=1e-5), "mismatch vs reference"

    print("KERNEL_OK")
</pallas_src>

<mosaic_0001>
module attributes {stable_mosaic.version = 11 : i64} {
  func.func @kernel(%arg0: i32, %arg1: memref<16x128xf32, #tpu.memory_space<vmem>>, %arg2: memref<1x128xf32, #tpu.memory_space<vmem>>, %arg3: memref<128x4xf32, #tpu.memory_space<vmem>>, %arg4: memref<4x128xf32, #tpu.memory_space<vmem>>, %arg5: memref<16x128xf32, #tpu.memory_space<vmem>>) attributes {dimension_semantics = [#tpu.dimension_semantics<parallel>], iteration_bounds = array<i64: 1>, scalar_prefetch = 0 : i64, scratch_operands = 0 : i64, tpu.core_type = #tpu.core_type<tc>, window_params = [{transform_indices = @transform_0, window_bounds = array<i64: 16, 128>}, {pipeline_mode = #tpu.pipeline_mode<synchronous>, transform_indices = @transform_1, window_bounds = array<i64: 1, 128>}, {pipeline_mode = #tpu.pipeline_mode<synchronous>, transform_indices = @transform_2, window_bounds = array<i64: 128, 4>}, {pipeline_mode = #tpu.pipeline_mode<synchronous>, transform_indices = @transform_3, window_bounds = array<i64: 4, 128>}, {transform_indices = @transform_4, window_bounds = array<i64: 16, 128>}]} {
    %c0 = arith.constant 0 : index
    %c0_0 = arith.constant 0 : index
    %0 = vector.load %arg1[%c0, %c0_0] : memref<16x128xf32, #tpu.memory_space<vmem>>, vector<16x128xf32>
    %1 = arith.mulf %0, %0 : vector<16x128xf32>
    %c0_1 = arith.constant 0 : index
    %c0_2 = arith.constant 0 : index
    %2 = vector.load %arg3[%c0_1, %c0_2] : memref<128x4xf32, #tpu.memory_space<vmem>>, vector<128x4xf32>
    %cst = arith.constant dense<0.000000e+00> : vector<16x4xf32>
    %3 = tpu.matmul %1, %2, %cst {dimension_numbers = #tpu.dot_dimension_numbers<[1], [0], [0], [1], [0, 0, 1, 1], [], []>} : vector<16x128xf32>, vector<128x4xf32>, vector<16x4xf32> -> vector<16x4xf32>
    %4 = math.rsqrt %3 : vector<16x4xf32>
    %c0_3 = arith.constant 0 : index
    %c0_4 = arith.constant 0 : index
    %5 = vector.load %arg4[%c0_3, %c0_4] : memref<4x128xf32, #tpu.memory_space<vmem>>, vector<4x128xf32>
    %cst_5 = arith.constant dense<0.000000e+00> : vector<16x128xf32>
    %6 = tpu.matmul %4, %5, %cst_5 {dimension_numbers = #tpu.dot_dimension_numbers<[1], [0], [0], [1], [0, 0, 1, 1], [], []>} : vector<16x4xf32>, vector<4x128xf32>, vector<16x128xf32> -> vector<16x128xf32>
    %c0_6 = arith.constant 0 : index
    %c0_7 = arith.constant 0 : index
    %7 = vector.load %arg2[%c0_6, %c0_7] : memref<1x128xf32, #tpu.memory_space<vmem>>, vector<1x128xf32>
    %8 = vector.broadcast %7 : vector<1x128xf32> to vector<16x128xf32>
    %9 = arith.subf %0, %8 : vector<16x128xf32>
    %10 = arith.mulf %9, %6 : vector<16x128xf32>
    %c0_8 = arith.constant 0 : index
    %c0_9 = arith.constant 0 : index
    %11 = vector.load %arg5[%c0_8, %c0_9] : memref<16x128xf32, #tpu.memory_space<vmem>>, vector<16x128xf32>
    tpu.vector_store %arg5[%c0_8, %c0_9], %10 {strides = array<i32>} : memref<16x128xf32, #tpu.memory_space<vmem>>, vector<16x128xf32>,
    return
  }
  func.func @transform_0(%arg0: i32) -> (i32, i32) {
    %c0_i32 = arith.constant 0 : i32
    %c0_i32_0 = arith.constant 0 : i32
    return %arg0, %c0_i32 : i32, i32
  }
  func.func @transform_1(%arg0: i32) -> (i32, i32) {
    %c0_i32 = arith.constant 0 : i32
    %c0_i32_0 = arith.constant 0 : i32
    %c0_i32_1 = arith.constant 0 : i32
    return %c0_i32, %c0_i32_0 : i32, i32
  }
  func.func @transform_2(%arg0: i32) -> (i32, i32) {
    %c0_i32 = arith.constant 0 : i32
    %c0_i32_0 = arith.constant 0 : i32
    %c0_i32_1 = arith.constant 0 : i32
    return %c0_i32, %c0_i32_0 : i32, i32
  }
  func.func @transform_3(%arg0: i32) -> (i32, i32) {
    %c0_i32 = arith.constant 0 : i32
    %c0_i32_0 = arith.constant 0 : i32
    %c0_i32_1 = arith.constant 0 : i32
    return %c0_i32, %c0_i32_0 : i32, i32
  }
  func.func @transform_4(%arg0: i32) -> (i32, i32) {
    %c0_i32 = arith.constant 0 : i32
    %c0_i32_0 = arith.constant 0 : i32
    return %arg0, %c0_i32 : i32, i32
  }
}

</mosaic_0001>

<llo_original>
// kernel: tpu_custom_call.1
$region0: #{tpu_custom_call.1}
  #allocation0 [shape = 'u32[]', space=smem, size = 0x4, offset = 0x4, fixed_abs, tag = 'smem constant byte address 0x4 - core index']
  #allocation1 [shape = 'u32[72,128]{1,0:T(1,128)}', space=vmem, size = 0x9000, scoped, tag = 'internal scratch']
  %s0 = inlined_call_operand.vmem [shape: f32[16,128], index: 0, kind: input, shape index: {}]
  %s1 = inlined_call_operand.vmem [shape: f32[1,128], index: 1, kind: input, shape index: {}]
  %s2 = inlined_call_operand.vmem [shape: f32[128,4], index: 2, kind: input, shape index: {}]
  %s3 = inlined_call_operand.vmem [shape: f32[4,128], index: 3, kind: input, shape index: {}]
  %s4 = inlined_call_operand.hbm [shape: f32[16,128], index: 4, kind: output, shape index: {}]
  %s5 = sld [smem:[#allocation0]]
  $region26: #{tpu_custom_call.1} parent=0
    _
  %s7 = ssub.s32 1, %s5
  %s8 = scalar_select 0, %s7, %s5
  $region1: #{tpu_custom_call.1} parent=0
    #allocation2 [shape = 'u8[8192]{0}', space=vmem, size = 0x2000, scoped, tag = 'output window, operand 0, single buffered']
    #allocation3 [shape = 's32[1]{0}', space=sflag, size = 0x4, scoped, tag = 'scoped memory for tpu_custom_call.1']
    %9 = vsyncpa [#allocation3], 0
    // Predicated region
    $region2: #{tpu_custom_call.1} parent=1 // pred_check
      _
    $region3: #{tpu_custom_call.1} parent=1 // pred_check_branch
      %11 = sbr.rel (0) target = $region5
    $region4: #{tpu_custom_call.1} parent=1 // pred_region
      _
    $region5: #{tpu_custom_call.1} parent=1 // pred_fallthru
      _
    // Predicated region
    $region6: #{tpu_custom_call.1} parent=1 // pred_check
      _
    $region7: #{tpu_custom_call.1} parent=1 // pred_check_branch
      %13 = sbr.rel (0) target = $region9
    $region8: #{tpu_custom_call.1} parent=1 // pred_region
      _
    $region9: #{tpu_custom_call.1} parent=1 // pred_fallthru
      _
    // Predicated region
    $region10: #{tpu_custom_call.1} parent=1 // pred_check
      _
    $region11: #{tpu_custom_call.1} parent=1 // pred_check_branch
      %15 = sbr.rel (0) target = $region13
    $region12: #{tpu_custom_call.1} parent=1 // pred_region
      _
    $region13: #{tpu_custom_call.1} parent=1 // pred_fallthru
      _
    // Predicated region
    $region14: #{tpu_custom_call.1} parent=1 // pred_check
      _
    $region15: #{tpu_custom_call.1} parent=1 // pred_check_branch
      %17 = sbr.rel (0) target = $region17
    $region16: #{tpu_custom_call.1} parent=1 // pred_region
      _
    $region17: #{tpu_custom_call.1} parent=1 // pred_fallthru
      _
    %v18 = vld [vmem:[%s0] sm:$0xff]
    %v19 = vld [vmem:[%s0 + $0x8] sm:$0xff]
    %v20 = vmul.f32 %v18, %v18
    %v21 = vmul.f32 %v19, %v19
    %v22 = vld [vmem:[%s2] sm:$0xff]
    %v23 = vld [vmem:[%s2 + $0x8] sm:$0xff]
    %v24 = vld [vmem:[%s2 + $0x10] sm:$0xff]
    %v25 = vld [vmem:[%s2 + $0x18] sm:$0xff]
    %v26 = vld [vmem:[%s2 + $0x20] sm:$0xff]
    %v27 = vld [vmem:[%s2 + $0x28] sm:$0xff]
    %v28 = vld [vmem:[%s2 + $0x30] sm:$0xff]
    %v29 = vld [vmem:[%s2 + $0x38] sm:$0xff]
    %v30 = vld [vmem:[%s2 + $0x40] sm:$0xff]
    %v31 = vld [vmem:[%s2 + $0x48] sm:$0xff]
    %v32 = vld [vmem:[%s2 + $0x50] sm:$0xff]
    %v33 = vld [vmem:[%s2 + $0x58] sm:$0xff]
    %v34 = vld [vmem:[%s2 + $0x60] sm:$0xff]
    %v35 = vld [vmem:[%s2 + $0x68] sm:$0xff]
    %v36 = vld [vmem:[%s2 + $0x70] sm:$0xff]
    %v37 = vld [vmem:[%s2 + $0x78] sm:$0xff]
    %38 = vmatpush.msra.mxu0 %v37
    %39 = vmatpush.msra.mxu0 %v36
    %40 = vmatpush.msra.mxu0 %v35
    %41 = vmatpush.msra.mxu0 %v34
    %42 = vmatpush.msra.mxu0 %v33
    %43 = vmatpush.msra.mxu0 %v32
    %44 = vmatpush.msra.mxu0 %v31
    %45 = vmatpush.msra.mxu0 %v30
    %46 = vmatpush.msra.mxu0 %v29
    %47 = vmatpush.msra.mxu0 %v28
    %48 = vmatpush.msra.mxu0 %v27
    %49 = vmatpush.msra.mxu0 %v26
    %50 = vmatpush.msra.mxu0 %v25
    %51 = vmatpush.msra.mxu0 %v24
    %52 = vmatpush.msra.mxu0 %v23
    %53 = vmatpush.msra.mxu0 %v22
    %54 = vmatmul.f32.gmra.mxu0 %v20
    %v55 = vpop.f32.mrf.mxu0
    %v56 = vadd.f32 0.0, %v55
    %57 = vmatmul.f32.gmra.mxu0 %v21
    %v58 = vpop.f32.mrf.mxu0
    %v59 = vadd.f32 0.0, %v58
    %60 = vdwg.mxu0
    %v61 = vrsqrt.pop %v56
    %v62 = vmul.f32 %v61, %v56
    %v63 = vmul.f32 %v62, %v61
    %v64 = vmul.f32 0.5, %v63
    %v65 = vsub.f32 1.5, %v64
    %v66 = vmul.f32 %v61, %v65
    %vm67 = vweird.f32 %v56
    %vm68 = vweird.f32 %v61
    %vm69 = vmor %vm67, %vm68
    %v70 = vsel %vm69, %v61, %v66
    %v71 = vrsqrt.pop %v59
    %v72 = vmul.f32 %v71, %v59
    %v73 = vmul.f32 %v72, %v71
    %v74 = vmul.f32 0.5, %v73
    %v75 = vsub.f32 1.5, %v74
    %v76 = vmul.f32 %v71, %v75
    %vm77 = vweird.f32 %v59
    %vm78 = vweird.f32 %v71
    %vm79 = vmor %vm77, %vm78
    %v80 = vsel %vm79, %v71, %v76
    %v81 = vld [vmem:[%s3] sm:$0xf]
    %vm82 = vcmask 31744
    %v84 = vsel %vm82, %v70, 0
    %v87 = vsel %vm82, %v80, 0
    %vm89 = vcmask 1043456
    %v91 = vsel %vm89, %v81, 0
    %93 = vmatpush.msra.mxu0 0.0
    %94 = vmatpush.msra.mxu0 0.0
    %95 = vmatpush.msra.mxu0 0.0
    %96 = vmatpush.msra.mxu0 0.0
    %97 = vmatpush.msra.mxu0 0.0
    %98 = vmatpush.msra.mxu0 0.0
    %99 = vmatpush.msra.mxu0 0.0
    %100 = vmatpush.msra.mxu0 0.0
    %101 = vmatpush.msra.mxu0 0.0
    %102 = vmatpush.msra.mxu0 0.0
    %103 = vmatpush.msra.mxu0 0.0
    %104 = vmatpush.msra.mxu0 0.0
    %105 = vmatpush.msra.mxu0 0.0
    %106 = vmatpush.msra.mxu0 0.0
    %107 = vmatpush.msra.mxu0 0.0
    %108 = vmatpush.msra.mxu0 %v91
    %109 = vmatmul.f32.gmra.mxu0 %v84
    %v110 = vpop.f32.mrf.mxu0
    %v111 = vadd.f32 0.0, %v110
    %112 = vmatmul.f32.gmra.mxu0 %v87
    %v113 = vpop.f32.mrf.mxu0
    %v114 = vadd.f32 0.0, %v113
    %115 = vdwg.mxu0
    %v116 = vld [vmem:[%s1] sm:$0x1]
    %v118 = vperm.slane %v116, 0
    %v120 = vsub.f32 %v18, %v118
    %v121 = vsub.f32 %v19, %v118
    %v122 = vmul.f32 %v120, %v111
    %v123 = vmul.f32 %v121, %v114
    %124 = vst [vmem:[#allocation2] sm:$0xff] %v122
    %125 = vst [vmem:[#allocation2 + $0x8] sm:$0xff] %v123
    // Predicated region
    $region18: #{tpu_custom_call.1} parent=1 // pred_check
      _
    $region19: #{tpu_custom_call.1} parent=1 // pred_check_branch
      %127 = sbr.rel (0) target = $region21
    $region20: #{tpu_custom_call.1} parent=1 // pred_region
      %129 = vsyncadd [#allocation3], 0
      %s130 = sshll.u32 [#allocation2], 4
      %s131 = int_to_ptr.vmem [resolvable:$true] %s130
      %s132 = sshll.u32 %s4, 4
      %s133 = int_to_ptr.hbm [resolvable:$true] %s132
      %138 = dma.vmem_to_hbm [thread:$0]  %s131, 256, %s133, [#allocation3], 128, 128, 8
    $region21: #{tpu_custom_call.1} parent=1 // pred_fallthru
      _
    // Predicated region
    $region22: #{tpu_custom_call.1} parent=1 // pred_check
      _
    $region23: #{tpu_custom_call.1} parent=1 // pred_check_branch
      %140 = sbr.rel (0) target = $region25
    $region24: #{tpu_custom_call.1} parent=1 // pred_region
      %142 = dma.done [#allocation3], 256
    $region25: #{tpu_custom_call.1} parent=1 // pred_fallthru
      _
    %143 = vsyncpa [#allocation3], 1

</llo_original>
